<compile_context>
chip_gen: v6e
topology: v6e:2x2x1
jax: 0.10.0
libtpu: 0.0.40
codegen_flags: <defaults>
</compile_context>

<pallas_src>
import functools

import jax
import jax.numpy as jnp
import numpy as np
from jax.experimental import pallas as pl
from jax.experimental.pallas import tpu as pltpu  # noqa: F401  (TPU backend)

LANE = 128  # TPU lane width; pad all feature dims to a multiple of this.


# ----------------------------- Fused Pallas kernel -------------------------------

def _fused_mlp_kernel(*refs, activations):
    """refs = (x_ref, w0_ref, b0_ref, w1_ref, b1_ref, ..., o_ref).

    Chains all Linear(+bias+activation) layers inside one kernel; intermediate
    activations stay on-chip (registers/VMEM), never touching HBM.
    """
    x_ref = refs[0]
    o_ref = refs[-1]
    param_refs = refs[1:-1]

    h = x_ref[...]
    for i, act in enumerate(activations):
        w = param_refs[2 * i][...]        # [Din_p, Dout_p]
        b = param_refs[2 * i + 1][...]    # [1, Dout_p]
        h = jnp.dot(h, w, preferred_element_type=jnp.float32) + b
        if act == "relu":
            h = jnp.maximum(h, 0.0)
        elif act == "tanh":
            h = jnp.tanh(h)
        elif act is not None:
            raise ValueError(f"unsupported activation: {act}")
    o_ref[...] = h.astype(o_ref.dtype)


def _fused_mlp_call(x_padded, params, activations):
    """Single pallas_call running the whole (lane-padded) MLP."""
    B = x_padded.shape[0]
    dout_p = params[-1][0].shape[1]

    flat_inputs = [x_padded]
    in_specs = [pl.BlockSpec(x_padded.shape, lambda: (0, 0))]
    for w, b in params:
        flat_inputs.append(w)
        flat_inputs.append(b)
        in_specs.append(pl.BlockSpec(w.shape, lambda: (0, 0)))
        in_specs.append(pl.BlockSpec(b.shape, lambda: (0, 0)))

    kernel = functools.partial(_fused_mlp_kernel, activations=tuple(activations))
    return pl.pallas_call(
        kernel,
        out_shape=jax.ShapeDtypeStruct((B, dout_p), jnp.float32),
        in_specs=in_specs,
        out_specs=pl.BlockSpec((B, dout_p), lambda: (0, 0)),
    )(*flat_inputs)


# --------------------------- Network definition ----------------------------

def _pad_up(n, m=LANE):
    return ((n + m - 1) // m) * m


def init_network_params(key, input_size, hidden_sizes, output_size):
    """Parameter init mirroring the PyTorch module's construction + reset_parameters.

    Layer structure (matches the PyTorch module exactly):
      input:   Linear(input_size, hidden_sizes[0])
      hidden:  for i in range(len(hidden_sizes)):
                 Linear(hidden_sizes[i], hidden_sizes[i] if i+1==len else hidden_sizes[i+1])
      output:  Linear(hidden_sizes[-1], output_size)

    Weight init: uniform(-1/sqrt(out_features), ...) for input/hidden (hidden_init uses
    weight.size()[0] == out_features); uniform(-0.003, 0.003) for output.
    Bias init: PyTorch Linear default uniform(-1/sqrt(fan_in), 1/sqrt(fan_in)).

    Weights are created in [in, out] layout, then zero-padded to 128-lane multiples;
    biases are stored as (1, Dout_padded).  Zero padding leaves the computed function
    unchanged (relu(0)=0, tanh(0)=0).
    """
    layer_dims = [(input_size, hidden_sizes[0])]
    for i in range(len(hidden_sizes)):
        out_dim = hidden_sizes[i] if i + 1 == len(hidden_sizes) else hidden_sizes[i + 1]
        layer_dims.append((hidden_sizes[i], out_dim))
    layer_dims.append((hidden_sizes[-1], output_size))

    params = []
    n_layers = len(layer_dims)
    for idx, (din, dout) in enumerate(layer_dims):
        key, kw, kb = jax.random.split(key, 3)
        lim_w = 0.003 if idx == n_layers - 1 else 1.0 / np.sqrt(dout)
        w = jax.random.uniform(kw, (din, dout), jnp.float32, -lim_w, lim_w)
        lim_b = 1.0 / np.sqrt(din)
        b = jax.random.uniform(kb, (dout,), jnp.float32, -lim_b, lim_b)

        din_p, dout_p = _pad_up(din), _pad_up(dout)
        w_p = jnp.zeros((din_p, dout_p), jnp.float32).at[:din, :dout].set(w)
        b_p = jnp.zeros((1, dout_p), jnp.float32).at[0, :dout].set(b)
        params.append((w_p, b_p))
    return params


@functools.partial(jax.jit, static_argnames=("output_size", "output_activation"))
def network_forward(params, x, output_size, output_activation="tanh"):
    """Forward pass matching Network.forward (one fused Pallas kernel)."""
    n = len(params)
    activations = ["relu"] * (n - 1) + [output_activation]

    # Zero-pad the input feature dim to the (padded) first-layer width.
    B, din = x.shape
    din_p = params[0][0].shape[0]
    x_p = jnp.zeros((B, din_p), jnp.float32).at[:, :din].set(x)

    out_p = _fused_mlp_call(x_p, params, activations)
    return out_p[:, :output_size]


# --------------------------------- main -------------------------------------

if __name__ == "__main__":
    batch = 8
    input_size = 16
    hidden_sizes = [32, 32]
    output_size = 4

    key = jax.random.PRNGKey(0)
    key, xkey = jax.random.split(key)

    params = init_network_params(key, input_size, hidden_sizes, output_size)
    x = jax.random.normal(xkey, (batch, input_size), jnp.float32)

    out = network_forward(params, x, output_size, output_activation="tanh")
    out = jax.block_until_ready(out)

    assert out.shape == (batch, output_size), out.shape
    assert bool(jnp.all(jnp.isfinite(out)))
    # tanh output gate -> values in [-1, 1]
    assert bool(jnp.all(jnp.abs(out) <= 1.0 + 1e-6))

    # TODO(synk): soft_update / torch.manual_seed replication are host-side training utilities,
    # not part of the forward pass, so they are not implemented as kernels.

    print("KERNEL_OK")
</pallas_src>

<mosaic_0001>
module attributes {stable_mosaic.version = 11 : i64} {
  func.func @_fused_mlp_kernel(%arg0: memref<8x128xf32, #tpu.memory_space<vmem>>, %arg1: memref<128x128xf32, #tpu.memory_space<vmem>>, %arg2: memref<1x128xf32, #tpu.memory_space<vmem>>, %arg3: memref<128x128xf32, #tpu.memory_space<vmem>>, %arg4: memref<1x128xf32, #tpu.memory_space<vmem>>, %arg5: memref<128x128xf32, #tpu.memory_space<vmem>>, %arg6: memref<1x128xf32, #tpu.memory_space<vmem>>, %arg7: memref<128x128xf32, #tpu.memory_space<vmem>>, %arg8: memref<1x128xf32, #tpu.memory_space<vmem>>, %arg9: memref<8x128xf32, #tpu.memory_space<vmem>>) attributes {dimension_semantics = [], scalar_prefetch = 0 : i64, scratch_operands = 0 : i64, tpu.core_type = #tpu.core_type<tc>} {
    %c0 = arith.constant 0 : index
    %c0_0 = arith.constant 0 : index
    %0 = vector.load %arg0[%c0, %c0_0] : memref<8x128xf32, #tpu.memory_space<vmem>>, vector<8x128xf32>
    %c0_1 = arith.constant 0 : index
    %c0_2 = arith.constant 0 : index
    %1 = vector.load %arg1[%c0_1, %c0_2] : memref<128x128xf32, #tpu.memory_space<vmem>>, vector<128x128xf32>
    %c0_3 = arith.constant 0 : index
    %c0_4 = arith.constant 0 : index
    %2 = vector.load %arg2[%c0_3, %c0_4] : memref<1x128xf32, #tpu.memory_space<vmem>>, vector<1x128xf32>
    %cst = arith.constant dense<0.000000e+00> : vector<8x128xf32>
    %3 = tpu.matmul %0, %1, %cst {dimension_numbers = #tpu.dot_dimension_numbers<[1], [0], [0], [1], [0, 0, 1, 1], [], []>} : vector<8x128xf32>, vector<128x128xf32>, vector<8x128xf32> -> vector<8x128xf32>
    %4 = vector.broadcast %2 : vector<1x128xf32> to vector<8x128xf32>
    %5 = arith.addf %3, %4 : vector<8x128xf32>
    %cst_5 = arith.constant 0.000000e+00 : f32
    %6 = vector.broadcast %cst_5 : f32 to vector<8x128xf32>
    %7 = arith.maximumf %5, %6 : vector<8x128xf32>
    %c0_6 = arith.constant 0 : index
    %c0_7 = arith.constant 0 : index
    %8 = vector.load %arg3[%c0_6, %c0_7] : memref<128x128xf32, #tpu.memory_space<vmem>>, vector<128x128xf32>
    %c0_8 = arith.constant 0 : index
    %c0_9 = arith.constant 0 : index
    %9 = vector.load %arg4[%c0_8, %c0_9] : memref<1x128xf32, #tpu.memory_space<vmem>>, vector<1x128xf32>
    %cst_10 = arith.constant dense<0.000000e+00> : vector<8x128xf32>
    %10 = tpu.matmul %7, %8, %cst_10 {dimension_numbers = #tpu.dot_dimension_numbers<[1], [0], [0], [1], [0, 0, 1, 1], [], []>} : vector<8x128xf32>, vector<128x128xf32>, vector<8x128xf32> -> vector<8x128xf32>
    %11 = vector.broadcast %9 : vector<1x128xf32> to vector<8x128xf32>
    %12 = arith.addf %10, %11 : vector<8x128xf32>
    %cst_11 = arith.constant 0.000000e+00 : f32
    %13 = vector.broadcast %cst_11 : f32 to vector<8x128xf32>
    %14 = arith.maximumf %12, %13 : vector<8x128xf32>
    %c0_12 = arith.constant 0 : index
    %c0_13 = arith.constant 0 : index
    %15 = vector.load %arg5[%c0_12, %c0_13] : memref<128x128xf32, #tpu.memory_space<vmem>>, vector<128x128xf32>
    %c0_14 = arith.constant 0 : index
    %c0_15 = arith.constant 0 : index
    %16 = vector.load %arg6[%c0_14, %c0_15] : memref<1x128xf32, #tpu.memory_space<vmem>>, vector<1x128xf32>
    %cst_16 = arith.constant dense<0.000000e+00> : vector<8x128xf32>
    %17 = tpu.matmul %14, %15, %cst_16 {dimension_numbers = #tpu.dot_dimension_numbers<[1], [0], [0], [1], [0, 0, 1, 1], [], []>} : vector<8x128xf32>, vector<128x128xf32>, vector<8x128xf32> -> vector<8x128xf32>
    %18 = vector.broadcast %16 : vector<1x128xf32> to vector<8x128xf32>
    %19 = arith.addf %17, %18 : vector<8x128xf32>
    %cst_17 = arith.constant 0.000000e+00 : f32
    %20 = vector.broadcast %cst_17 : f32 to vector<8x128xf32>
    %21 = arith.maximumf %19, %20 : vector<8x128xf32>
    %c0_18 = arith.constant 0 : index
    %c0_19 = arith.constant 0 : index
    %22 = vector.load %arg7[%c0_18, %c0_19] : memref<128x128xf32, #tpu.memory_space<vmem>>, vector<128x128xf32>
    %c0_20 = arith.constant 0 : index
    %c0_21 = arith.constant 0 : index
    %23 = vector.load %arg8[%c0_20, %c0_21] : memref<1x128xf32, #tpu.memory_space<vmem>>, vector<1x128xf32>
    %cst_22 = arith.constant dense<0.000000e+00> : vector<8x128xf32>
    %24 = tpu.matmul %21, %22, %cst_22 {dimension_numbers = #tpu.dot_dimension_numbers<[1], [0], [0], [1], [0, 0, 1, 1], [], []>} : vector<8x128xf32>, vector<128x128xf32>, vector<8x128xf32> -> vector<8x128xf32>
    %25 = vector.broadcast %23 : vector<1x128xf32> to vector<8x128xf32>
    %26 = arith.addf %24, %25 : vector<8x128xf32>
    %27 = math.tanh %26 : vector<8x128xf32>
    %c0_23 = arith.constant 0 : index
    %c0_24 = arith.constant 0 : index
    %28 = vector.load %arg9[%c0_23, %c0_24] : memref<8x128xf32, #tpu.memory_space<vmem>>, vector<8x128xf32>
    tpu.vector_store %arg9[%c0_23, %c0_24], %27 {strides = array<i32>} : memref<8x128xf32, #tpu.memory_space<vmem>>, vector<8x128xf32>,
    return
  }
}

</mosaic_0001>

<llo_original>
// kernel: network_forward.1
$region0: #{network_forward.1}
  #allocation0 [shape = 'u32[]', space=smem, size = 0x4, offset = 0x4, fixed_abs, tag = 'smem constant byte address 0x4 - core index']
  #allocation1 [shape = 'u32[144,128]{1,0:T(1,128)}', space=vmem, size = 0x12000, scoped, tag = 'internal scratch']
  %s0 = inlined_call_operand.vmem [shape: f32[8,128], index: 0, kind: input, shape index: {}]
  %s1 = inlined_call_operand.hbm [shape: f32[128,128], index: 1, kind: input, shape index: {}]
  %s2 = inlined_call_operand.vmem [shape: f32[1,128], index: 2, kind: input, shape index: {}]
  %s3 = inlined_call_operand.hbm [shape: f32[128,128], index: 3, kind: input, shape index: {}]
  %s4 = inlined_call_operand.vmem [shape: f32[1,128], index: 4, kind: input, shape index: {}]
  %s5 = inlined_call_operand.hbm [shape: f32[128,128], index: 5, kind: input, shape index: {}]
  %s6 = inlined_call_operand.vmem [shape: f32[1,128], index: 6, kind: input, shape index: {}]
  %s7 = inlined_call_operand.hbm [shape: f32[128,128], index: 7, kind: input, shape index: {}]
  %s8 = inlined_call_operand.vmem [shape: f32[1,128], index: 8, kind: input, shape index: {}]
  %s9 = inlined_call_operand.vmem [shape: f32[8,128], index: 9, kind: output, shape index: {}]
  %s10 = sld [smem:[#allocation0]]
  $region62: #{network_forward.1} parent=0
    _
  %s12 = ssub.s32 1, %s10
  %s13 = scalar_select 0, %s12, %s10
  $region1: #{network_forward.1} parent=0
    #allocation2 [shape = 'u8[65536]{0}', space=vmem, size = 0x10000, scoped, tag = 'input window, operand 1, single buffered']
    #allocation3 [shape = 's32[1]{0}', space=sflag, size = 0x4, scoped, tag = 'scoped memory for network_forward.1']
    #allocation4 [shape = 'u8[65536]{0}', space=vmem, size = 0x10000, scoped, tag = 'input window, operand 3, single buffered']
    #allocation5 [shape = 's32[1]{0}', space=sflag, size = 0x4, scoped, tag = 'scoped memory for network_forward.1']
    #allocation6 [shape = 'u8[65536]{0}', space=vmem, size = 0x10000, scoped, tag = 'input window, operand 5, single buffered']
    #allocation7 [shape = 'u8[65536]{0}', space=vmem, size = 0x10000, scoped, tag = 'input window, operand 7, single buffered']
    #allocation8 [shape = 's32[1]{0}', space=sflag, size = 0x4, scoped, tag = 'scoped memory for network_forward.1']
    %14 = vsyncpa [#allocation3], 0
    %15 = vsyncpa [#allocation5], 0
    %16 = vsyncpa [#allocation8], 0
    // Predicated region
    $region2: #{network_forward.1} parent=1 // pred_check
      _
    $region3: #{network_forward.1} parent=1 // pred_check_branch
      %18 = sbr.rel (0) target = $region5
    $region4: #{network_forward.1} parent=1 // pred_region
      _
    $region5: #{network_forward.1} parent=1 // pred_fallthru
      _
    // Predicated region
    $region6: #{network_forward.1} parent=1 // pred_check
      _
    $region7: #{network_forward.1} parent=1 // pred_check_branch
      %20 = sbr.rel (0) target = $region9
    $region8: #{network_forward.1} parent=1 // pred_region
      %s22 = ssub.s32 2048, 2048
      %23 = vsyncadd [#allocation3], %s22
      %s24 = sshll.u32 [#allocation2], 4
      %s25 = int_to_ptr.vmem [resolvable:$true] %s24
      %30 = dma.hbm_to_vmem [thread:$0]  %s1, 2048, %s25, [#allocation3], 128, 128, 8
    $region9: #{network_forward.1} parent=1 // pred_fallthru
      _
    // Predicated region
    $region10: #{network_forward.1} parent=1 // pred_check
      _
    $region11: #{network_forward.1} parent=1 // pred_check_branch
      %32 = sbr.rel (0) target = $region13
    $region12: #{network_forward.1} parent=1 // pred_region
      _
    $region13: #{network_forward.1} parent=1 // pred_fallthru
      _
    // Predicated region
    $region14: #{network_forward.1} parent=1 // pred_check
      _
    $region15: #{network_forward.1} parent=1 // pred_check_branch
      %34 = sbr.rel (0) target = $region17
    $region16: #{network_forward.1} parent=1 // pred_region
      %s36 = ssub.s32 2048, 2048
      %37 = vsyncadd [#allocation5], %s36
      %s38 = sshll.u32 [#allocation4], 4
      %s39 = int_to_ptr.vmem [resolvable:$true] %s38
      %44 = dma.hbm_to_vmem [thread:$0]  %s3, 2048, %s39, [#allocation5], 128, 128, 8
    $region17: #{network_forward.1} parent=1 // pred_fallthru
      _
    // Predicated region
    $region18: #{network_forward.1} parent=1 // pred_check
      _
    $region19: #{network_forward.1} parent=1 // pred_check_branch
      %46 = sbr.rel (0) target = $region21
    $region20: #{network_forward.1} parent=1 // pred_region
      _
    $region21: #{network_forward.1} parent=1 // pred_fallthru
      _
    // Predicated region
    $region22: #{network_forward.1} parent=1 // pred_check
      _
    $region23: #{network_forward.1} parent=1 // pred_check_branch
      %48 = sbr.rel (0) target = $region25
    $region24: #{network_forward.1} parent=1 // pred_region
      %s50 = ssub.s32 2048, 2048
      %51 = vsyncadd [#allocation5], %s50
      %s52 = sshll.u32 [#allocation6], 4
      %s53 = int_to_ptr.vmem [resolvable:$true] %s52
      %58 = dma.hbm_to_vmem [thread:$0]  %s5, 2048, %s53, [#allocation5], 128, 128, 8
    $region25: #{network_forward.1} parent=1 // pred_fallthru
      _
    // Predicated region
    $region26: #{network_forward.1} parent=1 // pred_check
      _
    $region27: #{network_forward.1} parent=1 // pred_check_branch
      %60 = sbr.rel (0) target = $region29
    $region28: #{network_forward.1} parent=1 // pred_region
      _
    $region29: #{network_forward.1} parent=1 // pred_fallthru
      _
    // Predicated region
    $region30: #{network_forward.1} parent=1 // pred_check
      _
    $region31: #{network_forward.1} parent=1 // pred_check_branch
      %62 = sbr.rel (0) target = $region33
    $region32: #{network_forward.1} parent=1 // pred_region
      %s64 = ssub.s32 2048, 2048
      %65 = vsyncadd [#allocation8], %s64
      %s66 = sshll.u32 [#allocation7], 4
      %s67 = int_to_ptr.vmem [resolvable:$true] %s66
      %72 = dma.hbm_to_vmem [thread:$0]  %s7, 2048, %s67, [#allocation8], 128, 128, 8
    $region33: #{network_forward.1} parent=1 // pred_fallthru
      _
    // Predicated region
    $region34: #{network_forward.1} parent=1 // pred_check
      _
    $region35: #{network_forward.1} parent=1 // pred_check_branch
      %74 = sbr.rel (0) target = $region37
    $region36: #{network_forward.1} parent=1 // pred_region
      _
    $region37: #{network_forward.1} parent=1 // pred_fallthru
      _
    // Predicated region
    $region38: #{network_forward.1} parent=1 // pred_check
      _
    $region39: #{network_forward.1} parent=1 // pred_check_branch
      %76 = sbr.rel (0) target = $region41
    $region40: #{network_forward.1} parent=1 // pred_region
      %77 = dma.done [#allocation3], 2048
    $region41: #{network_forward.1} parent=1 // pred_fallthru
      _
    // Predicated region
    $region42: #{network_forward.1} parent=1 // pred_check
      _
    $region43: #{network_forward.1} parent=1 // pred_check_branch
      %79 = sbr.rel (0) target = $region45
    $region44: #{network_forward.1} parent=1 // pred_region
      %80 = dma.done [#allocation5], 2048
    $region45: #{network_forward.1} parent=1 // pred_fallthru
      _
    // Predicated region
    $region46: #{network_forward.1} parent=1 // pred_check
      _
    $region47: #{network_forward.1} parent=1 // pred_check_branch
      %82 = sbr.rel (0) target = $region49
    $region48: #{network_forward.1} parent=1 // pred_region
      %83 = dma.done [#allocation5], 2048
    $region49: #{network_forward.1} parent=1 // pred_fallthru
      _
    // Predicated region
    $region50: #{network_forward.1} parent=1 // pred_check
      _
    $region51: #{network_forward.1} parent=1 // pred_check_branch
      %85 = sbr.rel (0) target = $region53
    $region52: #{network_forward.1} parent=1 // pred_region
      %86 = dma.done [#allocation8], 2048
    $region53: #{network_forward.1} parent=1 // pred_fallthru
      _
    %v87 = vld [vmem:[%s0] sm:$0xff]
    %v88 = vld [vmem:[#allocation2] sm:$0xff]
    %v89 = vld [vmem:[#allocation2 + $0x8] sm:$0xff]
    %v90 = vld [vmem:[#allocation2 + $0x10] sm:$0xff]
    %v91 = vld [vmem:[#allocation2 + $0x18] sm:$0xff]
    %v92 = vld [vmem:[#allocation2 + $0x20] sm:$0xff]
    %v93 = vld [vmem:[#allocation2 + $0x28] sm:$0xff]
    %v94 = vld [vmem:[#allocation2 + $0x30] sm:$0xff]
    %v95 = vld [vmem:[#allocation2 + $0x38] sm:$0xff]
    %v96 = vld [vmem:[#allocation2 + $0x40] sm:$0xff]
    %v97 = vld [vmem:[#allocation2 + $0x48] sm:$0xff]
    %v98 = vld [vmem:[#allocation2 + $0x50] sm:$0xff]
    %v99 = vld [vmem:[#allocation2 + $0x58] sm:$0xff]
    %v100 = vld [vmem:[#allocation2 + $0x60] sm:$0xff]
    %v101 = vld [vmem:[#allocation2 + $0x68] sm:$0xff]
    %v102 = vld [vmem:[#allocation2 + $0x70] sm:$0xff]
    %v103 = vld [vmem:[#allocation2 + $0x78] sm:$0xff]
    %v104 = vld [vmem:[%s2] sm:$0x1]
    %v106 = vlaneseq
    %v107 = vshrl.u32 %v106, 7
    %v108 = vsub.s32 0, %v107
    %v109 = vrot.slane %v104, %v108
    %111 = vmatprep.subr.mxu0 0.0
    %112 = vmatpush1.msra.mxu0 %v103
    %113 = vmatprep.subr.mxu0 0.0
    %114 = vmatpush1.msra.mxu0 %v102
    %115 = vmatprep.subr.mxu0 0.0
    %116 = vmatpush1.msra.mxu0 %v101
    %117 = vmatprep.subr.mxu0 0.0
    %118 = vmatpush1.msra.mxu0 %v100
    %119 = vmatprep.subr.mxu0 0.0
    %120 = vmatpush1.msra.mxu0 %v99
    %121 = vmatprep.subr.mxu0 0.0
    %122 = vmatpush1.msra.mxu0 %v98
    %123 = vmatprep.subr.mxu0 0.0
    %124 = vmatpush1.msra.mxu0 %v97
    %125 = vmatprep.subr.mxu0 0.0
    %126 = vmatpush1.msra.mxu0 %v96
    %127 = vmatprep.subr.mxu0 0.0
    %128 = vmatpush1.msra.mxu0 %v95
    %129 = vmatprep.subr.mxu0 0.0
    %130 = vmatpush1.msra.mxu0 %v94
    %131 = vmatprep.subr.mxu0 0.0
    %132 = vmatpush1.msra.mxu0 %v93
    %133 = vmatprep.subr.mxu0 0.0
    %134 = vmatpush1.msra.mxu0 %v92
    %135 = vmatprep.subr.mxu0 0.0
    %136 = vmatpush1.msra.mxu0 %v91
    %137 = vmatprep.subr.mxu0 0.0
    %138 = vmatpush1.msra.mxu0 %v90
    %139 = vmatprep.subr.mxu0 0.0
    %140 = vmatpush1.msra.mxu0 %v89
    %141 = vmatprep.subr.mxu0 0.0
    %142 = vmatpush1.msra.mxu0 %v88
    %143 = vmatprep.subr.mxu0 0.0
    %144 = vmatpush2.msra.mxu0 0.0
    %145 = vmatprep.subr.mxu0 0.0
    %146 = vmatpush2.msra.mxu0 0.0
    %147 = vmatprep.subr.mxu0 0.0
    %148 = vmatpush2.msra.mxu0 0.0
    %149 = vmatprep.subr.mxu0 0.0
    %150 = vmatpush2.msra.mxu0 0.0
    %151 = vmatprep.subr.mxu0 0.0
    %152 = vmatpush2.msra.mxu0 0.0
    %153 = vmatprep.subr.mxu0 0.0
    %154 = vmatpush2.msra.mxu0 0.0
    %155 = vmatprep.subr.mxu0 0.0
    %156 = vmatpush2.msra.mxu0 0.0
    %157 = vmatprep.subr.mxu0 0.0
    %158 = vmatpush2.msra.mxu0 0.0
    %159 = vmatprep.subr.mxu0 0.0
    %160 = vmatpush2.msra.mxu0 0.0
    %161 = vmatprep.subr.mxu0 0.0
    %162 = vmatpush2.msra.mxu0 0.0
    %163 = vmatprep.subr.mxu0 0.0
    %164 = vmatpush2.msra.mxu0 0.0
    %165 = vmatprep.subr.mxu0 0.0
    %166 = vmatpush2.msra.mxu0 0.0
    %167 = vmatprep.subr.mxu0 0.0
    %168 = vmatpush2.msra.mxu0 0.0
    %169 = vmatprep.subr.mxu0 0.0
    %170 = vmatpush2.msra.mxu0 0.0
    %171 = vmatprep.subr.mxu0 0.0
    %172 = vmatpush2.msra.mxu0 0.0
    %173 = vmatprep.subr.mxu0 0.0
    %174 = vmatpush2.msra.mxu0 0.0
    %175 = vmatprep.mubr.f32.mxu0 0.0
    %176 = vmatmul.mubr.f32.gmra.mxu0 %v87
    %v177 = vpop.f32.mrf.mxu0
    %v178 = vadd.f32 %v109, %v177
    %v179 = vpop.f32.mrf.mxu0
    %180 = vdwg.mxu0
    %v181 = vmax.f32 %v178, 0.0
    %v182 = vld [vmem:[#allocation4] sm:$0xff]
    %v183 = vld [vmem:[#allocation4 + $0x8] sm:$0xff]
    %v184 = vld [vmem:[#allocation4 + $0x10] sm:$0xff]
    %v185 = vld [vmem:[#allocation4 + $0x18] sm:$0xff]
    %v186 = vld [vmem:[#allocation4 + $0x20] sm:$0xff]
    %v187 = vld [vmem:[#allocation4 + $0x28] sm:$0xff]
    %v188 = vld [vmem:[#allocation4 + $0x30] sm:$0xff]
    %v189 = vld [vmem:[#allocation4 + $0x38] sm:$0xff]
    %v190 = vld [vmem:[#allocation4 + $0x40] sm:$0xff]
    %v191 = vld [vmem:[#allocation4 + $0x48] sm:$0xff]
    %v192 = vld [vmem:[#allocation4 + $0x50] sm:$0xff]
    %v193 = vld [vmem:[#allocation4 + $0x58] sm:$0xff]
    %v194 = vld [vmem:[#allocation4 + $0x60] sm:$0xff]
    %v195 = vld [vmem:[#allocation4 + $0x68] sm:$0xff]
    %v196 = vld [vmem:[#allocation4 + $0x70] sm:$0xff]
    %v197 = vld [vmem:[#allocation4 + $0x78] sm:$0xff]
    %v198 = vld [vmem:[%s4] sm:$0x1]
    %v200 = vlaneseq
    %v201 = vshrl.u32 %v200, 7
    %v202 = vsub.s32 0, %v201
    %v203 = vrot.slane %v198, %v202
    %205 = vmatprep.subr.mxu0 0.0
    %206 = vmatpush1.msra.mxu0 %v197
    %207 = vmatprep.subr.mxu0 0.0
    %208 = vmatpush1.msra.mxu0 %v196
    %209 = vmatprep.subr.mxu0 0.0
    %210 = vmatpush1.msra.mxu0 %v195
    %211 = vmatprep.subr.mxu0 0.0
    %212 = vmatpush1.msra.mxu0 %v194
    %213 = vmatprep.subr.mxu0 0.0
    %214 = vmatpush1.msra.mxu0 %v193
    %215 = vmatprep.subr.mxu0 0.0
    %216 = vmatpush1.msra.mxu0 %v192
    %217 = vmatprep.subr.mxu0 0.0
    %218 = vmatpush1.msra.mxu0 %v191
    %219 = vmatprep.subr.mxu0 0.0
    %220 = vmatpush1.msra.mxu0 %v190
    %221 = vmatprep.subr.mxu0 0.0
    %222 = vmatpush1.msra.mxu0 %v189
    %223 = vmatprep.subr.mxu0 0.0
    %224 = vmatpush1.msra.mxu0 %v188
    %225 = vmatprep.subr.mxu0 0.0
    %226 = vmatpush1.msra.mxu0 %v187
    %227 = vmatprep.subr.mxu0 0.0
    %228 = vmatpush1.msra.mxu0 %v186
    %229 = vmatprep.subr.mxu0 0.0
    %230 = vmatpush1.msra.mxu0 %v185
    %231 = vmatprep.subr.mxu0 0.0
    %232 = vmatpush1.msra.mxu0 %v184
    %233 = vmatprep.subr.mxu0 0.0
    %234 = vmatpush1.msra.mxu0 %v183
    %235 = vmatprep.subr.mxu0 0.0
    %236 = vmatpush1.msra.mxu0 %v182
    %237 = vmatprep.subr.mxu0 0.0
    %238 = vmatpush2.msra.mxu0 0.0
    %239 = vmatprep.subr.mxu0 0.0
    %240 = vmatpush2.msra.mxu0 0.0
    %241 = vmatprep.subr.mxu0 0.0
    %242 = vmatpush2.msra.mxu0 0.0
    %243 = vmatprep.subr.mxu0 0.0
    %244 = vmatpush2.msra.mxu0 0.0
    %245 = vmatprep.subr.mxu0 0.0
    %246 = vmatpush2.msra.mxu0 0.0
    %247 = vmatprep.subr.mxu0 0.0
    %248 = vmatpush2.msra.mxu0 0.0
    %249 = vmatprep.subr.mxu0 0.0
    %250 = vmatpush2.msra.mxu0 0.0
    %251 = vmatprep.subr.mxu0 0.0
    %252 = vmatpush2.msra.mxu0 0.0
    %253 = vmatprep.subr.mxu0 0.0
    %254 = vmatpush2.msra.mxu0 0.0
    %255 = vmatprep.subr.mxu0 0.0
    %256 = vmatpush2.msra.mxu0 0.0
    %257 = vmatprep.subr.mxu0 0.0
    %258 = vmatpush2.msra.mxu0 0.0
    %259 = vmatprep.subr.mxu0 0.0
    %260 = vmatpush2.msra.mxu0 0.0
    %261 = vmatprep.subr.mxu0 0.0
    %262 = vmatpush2.msra.mxu0 0.0
    %263 = vmatprep.subr.mxu0 0.0
    %264 = vmatpush2.msra.mxu0 0.0
    %265 = vmatprep.subr.mxu0 0.0
    %266 = vmatpush2.msra.mxu0 0.0
    %267 = vmatprep.subr.mxu0 0.0
    %268 = vmatpush2.msra.mxu0 0.0
    %269 = vmatprep.mubr.f32.mxu0 0.0
    %270 = vmatmul.mubr.f32.gmra.mxu0 %v181
    %v271 = vpop.f32.mrf.mxu0
    %v272 = vadd.f32 %v203, %v271
    %v273 = vpop.f32.mrf.mxu0
    %274 = vdwg.mxu0
    %v275 = vmax.f32 %v272, 0.0
    %v276 = vld [vmem:[#allocation6] sm:$0xff]
    %v277 = vld [vmem:[#allocation6 + $0x8] sm:$0xff]
    %v278 = vld [vmem:[#allocation6 + $0x10] sm:$0xff]
    %v279 = vld [vmem:[#allocation6 + $0x18] sm:$0xff]
    %v280 = vld [vmem:[#allocation6 + $0x20] sm:$0xff]
    %v281 = vld [vmem:[#allocation6 + $0x28] sm:$0xff]
    %v282 = vld [vmem:[#allocation6 + $0x30] sm:$0xff]
    %v283 = vld [vmem:[#allocation6 + $0x38] sm:$0xff]
    %v284 = vld [vmem:[#allocation6 + $0x40] sm:$0xff]
    %v285 = vld [vmem:[#allocation6 + $0x48] sm:$0xff]
    %v286 = vld [vmem:[#allocation6 + $0x50] sm:$0xff]
    %v287 = vld [vmem:[#allocation6 + $0x58] sm:$0xff]
    %v288 = vld [vmem:[#allocation6 + $0x60] sm:$0xff]
    %v289 = vld [vmem:[#allocation6 + $0x68] sm:$0xff]
    %v290 = vld [vmem:[#allocation6 + $0x70] sm:$0xff]
    %v291 = vld [vmem:[#allocation6 + $0x78] sm:$0xff]
    %v292 = vld [vmem:[%s6] sm:$0x1]
    %v294 = vlaneseq
    %v295 = vshrl.u32 %v294, 7
    %v296 = vsub.s32 0, %v295
    %v297 = vrot.slane %v292, %v296
    %299 = vmatprep.subr.mxu0 0.0
    %300 = vmatpush1.msra.mxu0 %v291
    %301 = vmatprep.subr.mxu0 0.0
    %302 = vmatpush1.msra.mxu0 %v290
    %303 = vmatprep.subr.mxu0 0.0
    %304 = vmatpush1.msra.mxu0 %v289
    %305 = vmatprep.subr.mxu0 0.0
    %306 = vmatpush1.msra.mxu0 %v288
    %307 = vmatprep.subr.mxu0 0.0
    %308 = vmatpush1.msra.mxu0 %v287
    %309 = vmatprep.subr.mxu0 0.0
    %310 = vmatpush1.msra.mxu0 %v286
    %311 = vmatprep.subr.mxu0 0.0
    %312 = vmatpush1.msra.mxu0 %v285
    %313 = vmatprep.subr.mxu0 0.0
    %314 = vmatpush1.msra.mxu0 %v284
    %315 = vmatprep.subr.mxu0 0.0
    %316 = vmatpush1.msra.mxu0 %v283
    %317 = vmatprep.subr.mxu0 0.0
    %318 = vmatpush1.msra.mxu0 %v282
    %319 = vmatprep.subr.mxu0 0.0
    %320 = vmatpush1.msra.mxu0 %v281
    %321 = vmatprep.subr.mxu0 0.0
    %322 = vmatpush1.msra.mxu0 %v280
    %323 = vmatprep.subr.mxu0 0.0
    %324 = vmatpush1.msra.mxu0 %v279
    %325 = vmatprep.subr.mxu0 0.0
    %326 = vmatpush1.msra.mxu0 %v278
    %327 = vmatprep.subr.mxu0 0.0
    %328 = vmatpush1.msra.mxu0 %v277
    %329 = vmatprep.subr.mxu0 0.0
    %330 = vmatpush1.msra.mxu0 %v276
    %331 = vmatprep.subr.mxu0 0.0
    %332 = vmatpush2.msra.mxu0 0.0
    %333 = vmatprep.subr.mxu0 0.0
    %334 = vmatpush2.msra.mxu0 0.0
    %335 = vmatprep.subr.mxu0 0.0
    %336 = vmatpush2.msra.mxu0 0.0
    %337 = vmatprep.subr.mxu0 0.0
    %338 = vmatpush2.msra.mxu0 0.0
    %339 = vmatprep.subr.mxu0 0.0
    %340 = vmatpush2.msra.mxu0 0.0
    %341 = vmatprep.subr.mxu0 0.0
    %342 = vmatpush2.msra.mxu0 0.0
    %343 = vmatprep.subr.mxu0 0.0
    %344 = vmatpush2.msra.mxu0 0.0
    %345 = vmatprep.subr.mxu0 0.0
    %346 = vmatpush2.msra.mxu0 0.0
    %347 = vmatprep.subr.mxu0 0.0
    %348 = vmatpush2.msra.mxu0 0.0
    %349 = vmatprep.subr.mxu0 0.0
    %350 = vmatpush2.msra.mxu0 0.0
    %351 = vmatprep.subr.mxu0 0.0
    %352 = vmatpush2.msra.mxu0 0.0
    %353 = vmatprep.subr.mxu0 0.0
    %354 = vmatpush2.msra.mxu0 0.0
    %355 = vmatprep.subr.mxu0 0.0
    %356 = vmatpush2.msra.mxu0 0.0
    %357 = vmatprep.subr.mxu0 0.0
    %358 = vmatpush2.msra.mxu0 0.0
    %359 = vmatprep.subr.mxu0 0.0
    %360 = vmatpush2.msra.mxu0 0.0
    %361 = vmatprep.subr.mxu0 0.0
    %362 = vmatpush2.msra.mxu0 0.0
    %363 = vmatprep.mubr.f32.mxu0 0.0
    %364 = vmatmul.mubr.f32.gmra.mxu0 %v275
    %v365 = vpop.f32.mrf.mxu0
    %v366 = vadd.f32 %v297, %v365
    %v367 = vpop.f32.mrf.mxu0
    %368 = vdwg.mxu0
    %v369 = vmax.f32 %v366, 0.0
    %v370 = vld [vmem:[#allocation7] sm:$0xff]
    %v371 = vld [vmem:[#allocation7 + $0x8] sm:$0xff]
    %v372 = vld [vmem:[#allocation7 + $0x10] sm:$0xff]
    %v373 = vld [vmem:[#allocation7 + $0x18] sm:$0xff]
    %v374 = vld [vmem:[#allocation7 + $0x20] sm:$0xff]
    %v375 = vld [vmem:[#allocation7 + $0x28] sm:$0xff]
    %v376 = vld [vmem:[#allocation7 + $0x30] sm:$0xff]
    %v377 = vld [vmem:[#allocation7 + $0x38] sm:$0xff]
    %v378 = vld [vmem:[#allocation7 + $0x40] sm:$0xff]
    %v379 = vld [vmem:[#allocation7 + $0x48] sm:$0xff]
    %v380 = vld [vmem:[#allocation7 + $0x50] sm:$0xff]
    %v381 = vld [vmem:[#allocation7 + $0x58] sm:$0xff]
    %v382 = vld [vmem:[#allocation7 + $0x60] sm:$0xff]
    %v383 = vld [vmem:[#allocation7 + $0x68] sm:$0xff]
    %v384 = vld [vmem:[#allocation7 + $0x70] sm:$0xff]
    %v385 = vld [vmem:[#allocation7 + $0x78] sm:$0xff]
    %v386 = vld [vmem:[%s8] sm:$0x1]
    %v388 = vlaneseq
    %v389 = vshrl.u32 %v388, 7
    %v390 = vsub.s32 0, %v389
    %v391 = vrot.slane %v386, %v390
    %393 = vmatprep.subr.mxu0 0.0
    %394 = vmatpush1.msra.mxu0 %v385
    %395 = vmatprep.subr.mxu0 0.0
    %396 = vmatpush1.msra.mxu0 %v384
    %397 = vmatprep.subr.mxu0 0.0
    %398 = vmatpush1.msra.mxu0 %v383
    %399 = vmatprep.subr.mxu0 0.0
    %400 = vmatpush1.msra.mxu0 %v382
    %401 = vmatprep.subr.mxu0 0.0
    %402 = vmatpush1.msra.mxu0 %v381
    %403 = vmatprep.subr.mxu0 0.0
    %404 = vmatpush1.msra.mxu0 %v380
    %405 = vmatprep.subr.mxu0 0.0
    %406 = vmatpush1.msra.mxu0 %v379
    %407 = vmatprep.subr.mxu0 0.0
    %408 = vmatpush1.msra.mxu0 %v378
    %409 = vmatprep.subr.mxu0 0.0
    %410 = vmatpush1.msra.mxu0 %v377
    %411 = vmatprep.subr.mxu0 0.0
    %412 = vmatpush1.msra.mxu0 %v376
    %413 = vmatprep.subr.mxu0 0.0
    %414 = vmatpush1.msra.mxu0 %v375
    %415 = vmatprep.subr.mxu0 0.0
    %416 = vmatpush1.msra.mxu0 %v374
    %417 = vmatprep.subr.mxu0 0.0
    %418 = vmatpush1.msra.mxu0 %v373
    %419 = vmatprep.subr.mxu0 0.0
    %420 = vmatpush1.msra.mxu0 %v372
    %421 = vmatprep.subr.mxu0 0.0
    %422 = vmatpush1.msra.mxu0 %v371
    %423 = vmatprep.subr.mxu0 0.0
    %424 = vmatpush1.msra.mxu0 %v370
    %425 = vmatprep.subr.mxu0 0.0
    %426 = vmatpush2.msra.mxu0 0.0
    %427 = vmatprep.subr.mxu0 0.0
    %428 = vmatpush2.msra.mxu0 0.0
    %429 = vmatprep.subr.mxu0 0.0
    %430 = vmatpush2.msra.mxu0 0.0
    %431 = vmatprep.subr.mxu0 0.0
    %432 = vmatpush2.msra.mxu0 0.0
    %433 = vmatprep.subr.mxu0 0.0
    %434 = vmatpush2.msra.mxu0 0.0
    %435 = vmatprep.subr.mxu0 0.0
    %436 = vmatpush2.msra.mxu0 0.0
    %437 = vmatprep.subr.mxu0 0.0
    %438 = vmatpush2.msra.mxu0 0.0
    %439 = vmatprep.subr.mxu0 0.0
    %440 = vmatpush2.msra.mxu0 0.0
    %441 = vmatprep.subr.mxu0 0.0
    %442 = vmatpush2.msra.mxu0 0.0
    %443 = vmatprep.subr.mxu0 0.0
    %444 = vmatpush2.msra.mxu0 0.0
    %445 = vmatprep.subr.mxu0 0.0
    %446 = vmatpush2.msra.mxu0 0.0
    %447 = vmatprep.subr.mxu0 0.0
    %448 = vmatpush2.msra.mxu0 0.0
    %449 = vmatprep.subr.mxu0 0.0
    %450 = vmatpush2.msra.mxu0 0.0
    %451 = vmatprep.subr.mxu0 0.0
    %452 = vmatpush2.msra.mxu0 0.0
    %453 = vmatprep.subr.mxu0 0.0
    %454 = vmatpush2.msra.mxu0 0.0
    %455 = vmatprep.subr.mxu0 0.0
    %456 = vmatpush2.msra.mxu0 0.0
    %457 = vmatprep.mubr.f32.mxu0 0.0
    %458 = vmatmul.mubr.f32.gmra.mxu0 %v369
    %v459 = vpop.f32.mrf.mxu0
    %v460 = vadd.f32 %v391, %v459
    %v461 = vpop.f32.mrf.mxu0
    %462 = vdwg.mxu0
    %v463 = vtanh.pop %v460
    %464 = vst [vmem:[%s9] sm:$0xff] %v463
    // Predicated region
    $region54: #{network_forward.1} parent=1 // pred_check
      _
    $region55: #{network_forward.1} parent=1 // pred_check_branch
      %466 = sbr.rel (0) target = $region57
    $region56: #{network_forward.1} parent=1 // pred_region
      _
    $region57: #{network_forward.1} parent=1 // pred_fallthru
      _
    // Predicated region
    $region58: #{network_forward.1} parent=1 // pred_check
      _
    $region59: #{network_forward.1} parent=1 // pred_check_branch
      %468 = sbr.rel (0) target = $region61
    $region60: #{network_forward.1} parent=1 // pred_region
      _
    $region61: #{network_forward.1} parent=1 // pred_fallthru
      _
    %469 = vsyncpa [#allocation3], 1
    %470 = vsyncpa [#allocation5], 1
    %471 = vsyncpa [#allocation8], 1

</llo_original>
